<compile_context>
chip_gen: v6e
topology: v6e:2x2x1
jax: 0.10.0
libtpu: 0.0.40
codegen_flags: <defaults>
</compile_context>

<pallas_src>
import functools

import jax
import jax.numpy as jnp
import numpy as np
from jax.experimental import pallas as pl
from jax.experimental.pallas import tpu as pltpu

NEG_MAX = float(jnp.finfo(jnp.float32).max)
MATMUL_DTYPE = jnp.bfloat16   # MXU operand / streaming dtype; accumulation stays f32


def _pick_tile(dim, target):
    """Largest tile <= target (multiple of 128) dividing dim; else the full dim."""
    if dim <= target:
        return dim
    t = target
    while t >= 128:
        if dim % t == 0:
            return t
        t //= 2
    return dim


def _tpu_vmem_capacity():
    try:
        return int(pltpu.get_tpu_info().vmem_capacity_bytes)
    except Exception:
        return 64 << 20          # conservative fallback (v7x per-core VMEM)


def _vmem_limit(*byte_counts):
    # double-buffered tiles + headroom for Mosaic internal scratch, capped at ~3/4 of the
    # generation's physical VMEM (~48 MiB on v7x, ~96 MiB on v5e/v6e).
    need = 2 * int(sum(byte_counts)) + (8 << 20)
    cap = max((_tpu_vmem_capacity() * 3) // 4, 32 << 20)
    return int(min(max(need, 32 << 20), cap))


# ----------------------------- tiled projection matmul -----------------------------
def _matmul_kernel(x_ref, w_ref, o_ref, acc_ref):
    @pl.when(pl.program_id(2) == 0)
    def _():
        acc_ref[...] = jnp.zeros(acc_ref.shape, acc_ref.dtype)

    acc_ref[...] += jnp.dot(x_ref[...], w_ref[...],
                            preferred_element_type=jnp.float32)

    @pl.when(pl.program_id(2) == pl.num_programs(2) - 1)
    def _():
        o_ref[...] = acc_ref[...].astype(o_ref.dtype)


def pallas_matmul(x, w, *, out_dtype=jnp.float32,
                  tm_target=512, tn_target=512, tk_target=512):
    """x: (M, K), w: (K, N) -> (M, N) out_dtype; tiled/pipelined over (M, N, K)."""
    M, K = x.shape
    K2, N = w.shape
    assert K == K2
    tm = _pick_tile(M, tm_target)
    tn = _pick_tile(N, tn_target)
    tk = _pick_tile(K, tk_target)
    grid = (M // tm, N // tn, K // tk)
    xb, wb = x.dtype.itemsize, w.dtype.itemsize
    ob = jnp.dtype(out_dtype).itemsize
    return pl.pallas_call(
        _matmul_kernel,
        out_shape=jax.ShapeDtypeStruct((M, N), out_dtype),
        grid=grid,
        in_specs=[pl.BlockSpec((tm, tk), lambda i, j, k: (i, k)),
                  pl.BlockSpec((tk, tn), lambda i, j, k: (k, j))],
        out_specs=pl.BlockSpec((tm, tn), lambda i, j, k: (i, j)),
        scratch_shapes=[pltpu.VMEM((tm, tn), jnp.float32)],
        compiler_params=pltpu.CompilerParams(
            dimension_semantics=("parallel", "parallel", "arbitrary"),
            vmem_limit_bytes=_vmem_limit(tm * tk * xb, tk * tn * wb,
                                         tm * tn * (4 + ob)),
        ),
        cost_estimate=pl.CostEstimate(
            flops=int(2 * M * N * K),
            transcendentals=0,
            bytes_accessed=int(M * K * xb + K * N * wb + M * N * ob)),
    )(x, w)


# ----------------------------- flash cosine attention -----------------------------
def _flash_cosine_kernel(causal, qt, kt,
                         temp_ref, q_ref, k_ref, v_ref, pos_ref,
                         qmask_ref, kmask_ref,
                         o_ref, m_sc, l_sc, acc_sc, qn_sc):
    # q_ref: (1, qt, 1, H, D) bf16   k_ref/v_ref: (1, kt, 1, H, D) bf16
    # pos_ref: (qt, kt) bf16         qmask_ref: (1, qt, 1) i32   kmask_ref: (1, 1, kt) i32
    # o_ref: (1, qt, H*D) bf16
    # scratch: m_sc / l_sc: (H, qt, 1) f32, acc_sc: (H, qt, D) f32, qn_sc: (H, qt, D) bf16
    qi = pl.program_id(1)
    ki = pl.program_id(2)

    def l2norm(t):               # F.normalize(p=2, dim=-1, eps=1e-12) via EUP rsqrt
        ss = jnp.sum(t * t, axis=-1, keepdims=True)
        return t * jax.lax.rsqrt(jnp.maximum(ss, 1e-24))

    @pl.when(ki == 0)
    def _init():
        m_sc[...] = jnp.full(m_sc.shape, -jnp.inf, m_sc.dtype)
        l_sc[...] = jnp.zeros(l_sc.shape, l_sc.dtype)
        acc_sc[...] = jnp.zeros(acc_sc.shape, acc_sc.dtype)
        # hoisted q-side work: done once per (batch, q-tile), not per kv step
        q = q_ref[0, :, 0].astype(jnp.float32)                       # (qt, H, D)
        qn_sc[...] = jnp.transpose(l2norm(q), (1, 0, 2)).astype(MATMUL_DTYPE)

    def _compute():
        temp = temp_ref[0]
        k = k_ref[0, :, 0].astype(jnp.float32)                       # (kt, H, D)
        kn = jnp.transpose(l2norm(k), (1, 0, 2)).astype(MATMUL_DTYPE)    # (H, kt, D)
        vh = jnp.transpose(v_ref[0, :, 0], (1, 0, 2)).astype(MATMUL_DTYPE)  # (H, kt, D)

        # per-head cosine scores (batched matmul, contraction over D, no explicit .T)
        s = jnp.einsum('hqd,hkd->hqk', qn_sc[...], kn,
                       preferred_element_type=jnp.float32)           # (H, qt, kt)
        s = s * temp + pos_ref[...].astype(jnp.float32)[None, :, :]

        keep_q = qmask_ref[0] == 0          # (qt, 1)  True == real token
        keep_k = kmask_ref[0] == 0          # (1, kt)
        allowed = jnp.logical_and(keep_q, keep_k)                    # (qt, kt)
        if causal:
            row = jax.lax.broadcasted_iota(jnp.int32, (qt, kt), 0) + qi * qt
            col = jax.lax.broadcasted_iota(jnp.int32, (qt, kt), 1) + ki * kt
            allowed = jnp.logical_and(allowed, col <= row)
        s = jnp.where(allowed[None, :, :], s, -NEG_MAX)   # masked_fill_(attn_mask, -max)

        # online-softmax update
        m_prev = m_sc[...]
        m_new = jnp.maximum(m_prev, jnp.max(s, axis=-1, keepdims=True))
        alpha = jnp.exp(m_prev - m_new)
        p = jnp.exp(s - m_new)                                       # (H, qt, kt)
        l_sc[...] = alpha * l_sc[...] + jnp.sum(p, axis=-1, keepdims=True)
        pv = jnp.einsum('hqk,hkd->hqd', p.astype(MATMUL_DTYPE), vh,
                        preferred_element_type=jnp.float32)          # (H, qt, D)
        acc_sc[...] = alpha * acc_sc[...] + pv
        m_sc[...] = m_new
        # TODO(synk): dropout omitted (inference semantics -> identity)

    if causal:
        # skip kv tiles that lie entirely above the causal diagonal
        pl.when(ki * kt <= qi * qt + (qt - 1))(_compute)
    else:
        _compute()

    @pl.when(ki == pl.num_programs(2) - 1)
    def _finalize():
        inv_l = pl.reciprocal(l_sc[...], approx=True)                # EUP
        out = acc_sc[...] * inv_l                                    # (H, qt, D)
        # lane-dense store: (qt, H*D) slab instead of lane-sparse (qt, H, D) with D < 128
        o_ref[0] = (jnp.transpose(out, (1, 0, 2))
                    .reshape(qt, -1).astype(o_ref.dtype))


def cosine_attend(qkv, pos, mask, temperature, causal=True, *, tile_target=256):
    """qkv: (B, N, 3, H, D) bf16; pos: (N, N); mask: (B, N) bool -> (B, N, H*D) bf16."""
    B, N, three, H, D = qkv.shape
    assert three == 3
    qt = _pick_tile(N, tile_target)
    kt = _pick_tile(N, tile_target)
    grid = (B, N // qt, N // kt)

    mask_i = mask.astype(jnp.int32)
    mask_col = mask_i.reshape(B, N, 1)     # query-side mask
    mask_row = mask_i.reshape(B, 1, N)     # key-side mask
    temp_arr = jnp.asarray(temperature, jnp.float32).reshape(1)
    pos_b = pos.astype(MATMUL_DTYPE)

    kernel = functools.partial(_flash_cosine_kernel, bool(causal), qt, kt)

    if causal:
        def kv_idx(qi, ki):
            # clamp above-diagonal (skipped) kv tiles to the last needed block so their
            # block index equals the previous step's -> the pipeline suppresses the DMA.
            return jnp.minimum(ki, (qi * qt + qt - 1) // kt)
    else:
        def kv_idx(qi, ki):
            return ki

    qb = qkv.dtype.itemsize
    cf = 0.5 if causal else 1.0
    flops = int(4 * B * H * N * N * D * cf)       # qk^T + p@v
    trans = int(B * H * N * N * cf)               # exp
    bytes_acc = int(qb * 3 * B * N * H * D + 2 * B * N * H * D + 2 * N * N + 8 * B * N)

    tile_in = qb * (qt + 2 * kt) * H * D + 2 * qt * kt + 4 * (qt + kt)
    tile_out = 2 * qt * H * D
    scratch = 4 * (2 * H * qt + H * qt * D) + 2 * H * qt * D

    return pl.pallas_call(
        kernel,
        out_shape=jax.ShapeDtypeStruct((B, N, H * D), MATMUL_DTYPE),
        grid=grid,
        in_specs=[
            pl.BlockSpec(memory_space=pltpu.MemorySpace.SMEM),                   # temperature
            pl.BlockSpec((1, qt, 1, H, D), lambda b, qi, ki: (b, qi, 0, 0, 0)),  # q
            pl.BlockSpec((1, kt, 1, H, D),
                         lambda b, qi, ki: (b, kv_idx(qi, ki), 1, 0, 0)),        # k
            pl.BlockSpec((1, kt, 1, H, D),
                         lambda b, qi, ki: (b, kv_idx(qi, ki), 2, 0, 0)),        # v
            pl.BlockSpec((qt, kt), lambda b, qi, ki: (qi, kv_idx(qi, ki))),      # pos tile
            pl.BlockSpec((1, qt, 1), lambda b, qi, ki: (b, qi, 0)),              # q mask
            pl.BlockSpec((1, 1, kt), lambda b, qi, ki: (b, 0, kv_idx(qi, ki))),  # k mask
        ],
        out_specs=pl.BlockSpec((1, qt, H * D), lambda b, qi, ki: (b, qi, 0)),
        scratch_shapes=[pltpu.VMEM((H, qt, 1), jnp.float32),
                        pltpu.VMEM((H, qt, 1), jnp.float32),
                        pltpu.VMEM((H, qt, D), jnp.float32),
                        pltpu.VMEM((H, qt, D), MATMUL_DTYPE)],
        compiler_params=pltpu.CompilerParams(
            dimension_semantics=("parallel", "parallel", "arbitrary"),
            vmem_limit_bytes=_vmem_limit(tile_in, tile_out, scratch),
        ),
        cost_estimate=pl.CostEstimate(flops=flops, transcendentals=trans,
                                      bytes_accessed=bytes_acc),
    )(temp_arr, qkv, qkv, qkv, pos_b, mask_col, mask_row)


# ----------------------------- module wrapper -----------------------------
class CosineAttentionPallas:
    """Pallas-TPU forward of the PyTorch CosineAttention (softmax activation, no bias)."""

    def __init__(self, n_feats, head_dim, n_heads, temperature=15.5, causal=True,
                 bias=False, key=None):
        assert not bias
        self.n_feats = n_feats
        self.head_dim = head_dim
        self.n_heads = n_heads
        self.temperature = float(temperature)
        self.causal = bool(causal)

        H, D, C = n_heads, head_dim, n_feats
        k1, k2 = jax.random.split(key)
        # PyTorch Linear weights: (out_features, in_features); qkv out feature
        # o = h*(D*3) + d*3 + qkv  (matches rearrange 'b n (h d qkv) -> qkv b h n d').
        self.w_qkv = jax.random.normal(k1, (3 * H * D, C), jnp.float32) * 0.02
        self.w_out = jax.random.normal(k2, (C, H * D), jnp.float32) * 0.02

        # Pre-transposed / column-permuted (bf16) copies used by the kernels:
        # new column n = qkv*H*D + h*D + d, so the projection output reshapes directly
        # to (B, N, 3, H, D) with zero wrapper-side transposes.
        n_idx = np.arange(3 * H * D)
        qkv_i, rem = n_idx // (H * D), n_idx % (H * D)
        h_i, d_i = rem // D, rem % D
        orig_cols = h_i * (D * 3) + d_i * 3 + qkv_i
        self.w_qkv_t = jnp.asarray(self.w_qkv.T[:, orig_cols], dtype=MATMUL_DTYPE)  # (C, 3HD)
        self.w_out_t = jnp.asarray(self.w_out.T, dtype=MATMUL_DTYPE)                # (HD, C)

    def __call__(self, x, pos_fn, mask=None):
        B, N, C = x.shape
        H, D = self.n_heads, self.head_dim
        if mask is None:
            mask = jnp.zeros((B, N), dtype=jnp.bool_)

        # qkv projection: (B*N, C) @ (C, 3HD) -> bf16 -> reshape straight to (B, N, 3, H, D)
        qkv = pallas_matmul(x.astype(MATMUL_DTYPE).reshape(B * N, C), self.w_qkv_t,
                            out_dtype=MATMUL_DTYPE)
        qkv = qkv.reshape(B, N, 3, H, D)

        pos = pos_fn(N).astype(jnp.float32)                         # (N, N) bias on scores
        out = cosine_attend(qkv, pos, mask, self.temperature, self.causal)  # (B, N, H*D) bf16

        # lane-dense (B, N, H*D) bf16 flows straight into out_proj, no transpose / cast
        out = pallas_matmul(out.reshape(B * N, H * D), self.w_out_t, out_dtype=jnp.float32)
        return out.reshape(B, N, C)


# ----------------------------- pure-JAX reference -----------------------------
def reference(x, w_qkv, w_out, pos, mask, temperature, causal, H, D):
    """Mirror of the PyTorch module with the same bf16 rounding points as the kernels."""
    B, N, C = x.shape

    def mm(a, b):
        return jnp.dot(a.astype(MATMUL_DTYPE), b.astype(MATMUL_DTYPE),
                       preferred_element_type=jnp.float32)

    qkv = mm(x.reshape(B * N, C), w_qkv.T).astype(MATMUL_DTYPE)     # bf16 storage (as kernel)
    qkv = qkv.reshape(B, N, H, D, 3).astype(jnp.float32)
    q = jnp.transpose(qkv[..., 0], (0, 2, 1, 3))
    k = jnp.transpose(qkv[..., 1], (0, 2, 1, 3))
    v = jnp.transpose(qkv[..., 2], (0, 2, 1, 3))

    def l2n(t):
        ss = jnp.sum(t * t, axis=-1, keepdims=True)
        return t * jax.lax.rsqrt(jnp.maximum(ss, 1e-24))

    qn, kn = l2n(q), l2n(k)
    pos_b = pos.astype(MATMUL_DTYPE).astype(jnp.float32)
    dots = jnp.einsum('bhid,bhjd->bhij', qn.astype(MATMUL_DTYPE), kn.astype(MATMUL_DTYPE),
                      preferred_element_type=jnp.float32) * temperature + pos_b
    keep = ~mask
    allowed = keep[:, None, :, None] & keep[:, None, None, :]
    if causal:
        allowed = allowed & jnp.tril(jnp.ones((N, N), bool))
    dots = jnp.where(allowed, dots, -NEG_MAX)
    attn = jax.nn.softmax(dots, axis=-1)
    out = jnp.einsum('bhij,bhjd->bhid', attn.astype(MATMUL_DTYPE), v.astype(MATMUL_DTYPE),
                     preferred_element_type=jnp.float32)
    out = jnp.transpose(out, (0, 2, 1, 3)).reshape(B * N, H * D).astype(MATMUL_DTYPE)
    return mm(out, w_out.T).reshape(B, N, C)


# ----------------------------- main -----------------------------
if __name__ == "__main__":
    B, N, C, H, D = 2, 8, 32, 4, 8

    root = jax.random.PRNGKey(0)
    kx, kw = jax.random.split(root)
    x = jax.random.normal(kx, (B, N, C), jnp.float32)

    def pos_fn(n):                                  # deterministic (n, n) positional bias
        i = jnp.arange(n)[:, None]
        j = jnp.arange(n)[None, :]
        return -0.1 * jnp.abs(i - j).astype(jnp.float32)

    mod = CosineAttentionPallas(n_feats=C, head_dim=D, n_heads=H,
                                temperature=15.5, causal=True, key=kw)

    # no-padding case
    out = jax.block_until_ready(mod(x, pos_fn))
    ref = reference(x, mod.w_qkv, mod.w_out, pos_fn(N),
                    jnp.zeros((B, N), jnp.bool_), 15.5, True, H, D)
    assert out.shape == (B, N, C)
    assert jnp.allclose(out, ref, rtol=2e-2, atol=2e-3), "mismatch vs reference (no mask)"

    # with a padding mask
    mask = jnp.zeros((B, N), jnp.bool_).at[0, N - 2:].set(True)
    out_m = jax.block_until_ready(mod(x, pos_fn, mask))
    ref_m = reference(x, mod.w_qkv, mod.w_out, pos_fn(N), mask, 15.5, True, H, D)
    assert jnp.allclose(out_m, ref_m, rtol=2e-2, atol=2e-3), "mismatch vs reference (mask)"

    print("KERNEL_OK")
</pallas_src>

<mosaic_0001>
module attributes {stable_mosaic.version = 11 : i64} {
  func.func @_matmul_kernel(%arg0: i32, %arg1: i32, %arg2: i32, %arg3: memref<16x32xbf16, #tpu.memory_space<vmem>>, %arg4: memref<32x96xbf16, #tpu.memory_space<vmem>>, %arg5: memref<16x96xbf16, #tpu.memory_space<vmem>>, %arg6: memref<16x96xf32, #tpu.memory_space<vmem>>) attributes {dimension_semantics = [#tpu.dimension_semantics<parallel>, #tpu.dimension_semantics<parallel>, #tpu.dimension_semantics<arbitrary>], iteration_bounds = array<i64: 1, 1, 1>, scalar_prefetch = 0 : i64, scratch_operands = 1 : i64, tpu.core_type = #tpu.core_type<tc>, window_params = [{transform_indices = @transform_0, window_bounds = array<i64: 16, 32>}, {transform_indices = @transform_1, window_bounds = array<i64: 32, 96>}, {transform_indices = @transform_2, window_bounds = array<i64: 16, 96>}]} {
    %c0_i32 = arith.constant 0 : i32
    %0 = arith.cmpi eq, %arg2, %c0_i32 : i32
    %1 = arith.extui %0 : i1 to i32
    %c0_i32_0 = arith.constant 0 : i32
    %2 = arith.cmpi ne, %1, %c0_i32_0 : i32
    scf.if %2 {
      %cst_10 = arith.constant 0.000000e+00 : f32
      %12 = vector.broadcast %cst_10 : f32 to vector<16x96xf32>
      %c0_11 = arith.constant 0 : index
      %c0_12 = arith.constant 0 : index
      %13 = vector.load %arg6[%c0_11, %c0_12] : memref<16x96xf32, #tpu.memory_space<vmem>>, vector<16x96xf32>
      tpu.vector_store %arg6[%c0_11, %c0_12], %12 {strides = array<i32>} : memref<16x96xf32, #tpu.memory_space<vmem>>, vector<16x96xf32>,
    } else {
    }
    %c0 = arith.constant 0 : index
    %c0_1 = arith.constant 0 : index
    %3 = vector.load %arg6[%c0, %c0_1] : memref<16x96xf32, #tpu.memory_space<vmem>>, vector<16x96xf32>
    %c0_2 = arith.constant 0 : index
    %c0_3 = arith.constant 0 : index
    %4 = vector.load %arg3[%c0_2, %c0_3] : memref<16x32xbf16, #tpu.memory_space<vmem>>, vector<16x32xbf16>
    %c0_4 = arith.constant 0 : index
    %c0_5 = arith.constant 0 : index
    %5 = vector.load %arg4[%c0_4, %c0_5] : memref<32x96xbf16, #tpu.memory_space<vmem>>, vector<32x96xbf16>
    %cst = arith.constant dense<0.000000e+00> : vector<16x96xf32>
    %6 = tpu.matmul %4, %5, %cst {dimension_numbers = #tpu.dot_dimension_numbers<[1], [0], [0], [1], [0, 0, 1, 1], [], []>} : vector<16x32xbf16>, vector<32x96xbf16>, vector<16x96xf32> -> vector<16x96xf32>
    %7 = arith.addf %3, %6 : vector<16x96xf32>
    %c0_6 = arith.constant 0 : index
    %c0_7 = arith.constant 0 : index
    %8 = vector.load %arg6[%c0_6, %c0_7] : memref<16x96xf32, #tpu.memory_space<vmem>>, vector<16x96xf32>
    tpu.vector_store %arg6[%c0_6, %c0_7], %7 {strides = array<i32>} : memref<16x96xf32, #tpu.memory_space<vmem>>, vector<16x96xf32>,
    %c0_i32_8 = arith.constant 0 : i32
    %9 = arith.cmpi eq, %arg2, %c0_i32_8 : i32
    %10 = arith.extui %9 : i1 to i32
    %c0_i32_9 = arith.constant 0 : i32
    %11 = arith.cmpi ne, %10, %c0_i32_9 : i32
    scf.if %11 {
      %c0_10 = arith.constant 0 : index
      %c0_11 = arith.constant 0 : index
      %12 = vector.load %arg6[%c0_10, %c0_11] : memref<16x96xf32, #tpu.memory_space<vmem>>, vector<16x96xf32>
      %13 = arith.truncf %12 : vector<16x96xf32> to vector<16x96xbf16>
      %c0_12 = arith.constant 0 : index
      %c0_13 = arith.constant 0 : index
      %14 = vector.load %arg5[%c0_12, %c0_13] : memref<16x96xbf16, #tpu.memory_space<vmem>>, vector<16x96xbf16>
      tpu.vector_store %arg5[%c0_12, %c0_13], %13 {strides = array<i32>} : memref<16x96xbf16, #tpu.memory_space<vmem>>, vector<16x96xbf16>,
    } else {
    }
    return
  }
  func.func @transform_0(%arg0: i32, %arg1: i32, %arg2: i32) -> (i32, i32) {
    %c0_i32 = arith.constant 0 : i32
    return %arg0, %arg2 : i32, i32
  }
  func.func @transform_1(%arg0: i32, %arg1: i32, %arg2: i32) -> (i32, i32) {
    %c0_i32 = arith.constant 0 : i32
    return %arg2, %arg1 : i32, i32
  }
  func.func @transform_2(%arg0: i32, %arg1: i32, %arg2: i32) -> (i32, i32) {
    %c0_i32 = arith.constant 0 : i32
    return %arg0, %arg1 : i32, i32
  }
}

</mosaic_0001>

<llo_original>
// kernel: tpu_custom_call.1
$region0: #{tpu_custom_call.1}
  #allocation0 [shape = 'u32[]', space=smem, size = 0x4, offset = 0x4, fixed_abs, tag = 'smem constant byte address 0x4 - core index']
  #allocation1 [shape = 'u32[144,128]{1,0:T(1,128)}', space=vmem, size = 0x12000, scoped, tag = 'internal scratch']
  #allocation2 [shape = 'f32[16,96]{1,0:T(8,128)}', space=vmem, size = 0x2000, scoped, tag = 'scratch operand']
  %s0 = inlined_call_operand.hbm [shape: bf16[16,32], index: 0, kind: input, shape index: {}]
  %s1 = inlined_call_operand.hbm [shape: bf16[32,96], index: 1, kind: input, shape index: {}]
  %s2 = inlined_call_operand.hbm [shape: bf16[16,96], index: 2, kind: output, shape index: {}]
  %s3 = sld [smem:[#allocation0]]
  $region34: #{tpu_custom_call.1} parent=0
    _
  %s5 = ssub.s32 1, %s3
  %s6 = scalar_select 0, %s5, %s3
  $region1: #{tpu_custom_call.1} parent=0
    #allocation3 [shape = 'u8[4096]{0}', space=vmem, size = 0x1000, scoped, tag = 'input window, operand 0, single buffered']
    #allocation4 [shape = 's32[1]{0}', space=sflag, size = 0x4, scoped, tag = 'scoped memory for tpu_custom_call.1']
    #allocation5 [shape = 's32[1]{0}', space=sflag, size = 0x4, scoped, tag = 'scoped memory for tpu_custom_call.1']
    #allocation6 [shape = 'u8[8192]{0}', space=vmem, size = 0x2000, scoped, tag = 'input window, operand 1, single buffered']
    #allocation7 [shape = 's32[1]{0}', space=sflag, size = 0x4, scoped, tag = 'scoped memory for tpu_custom_call.1']
    #allocation8 [shape = 'u8[4096]{0}', space=vmem, size = 0x1000, scoped, tag = 'output window, operand 0, single buffered']
    %7 = vsyncpa [#allocation4], 0
    %8 = vsyncpa [#allocation7], 0
    %9 = vsyncpa [#allocation5], 0
    // Predicated region
    $region2: #{tpu_custom_call.1} parent=1 // pred_check
      _
    $region3: #{tpu_custom_call.1} parent=1 // pred_check_branch
      %11 = sbr.rel (0) target = $region5
    $region4: #{tpu_custom_call.1} parent=1 // pred_region
      %s13 = ssub.s32 128, 128
      %14 = vsyncadd [#allocation4], %s13
      %s15 = sshll.u32 [#allocation3], 4
      %s16 = int_to_ptr.vmem [resolvable:$true] %s15
      %21 = dma.hbm_to_vmem [thread:$0]  %s0, 128, %s16, [#allocation4], 64, 64, 4
    $region5: #{tpu_custom_call.1} parent=1 // pred_fallthru
      _
    // Predicated region
    $region6: #{tpu_custom_call.1} parent=1 // pred_check
      _
    $region7: #{tpu_custom_call.1} parent=1 // pred_check_branch
      %23 = sbr.rel (0) target = $region9
    $region8: #{tpu_custom_call.1} parent=1 // pred_region
      %s25 = ssub.s32 256, 256
      %26 = vsyncadd [#allocation7], %s25
      %s27 = sshll.u32 [#allocation6], 4
      %s28 = int_to_ptr.vmem [resolvable:$true] %s27
      %33 = dma.hbm_to_vmem [thread:$0]  %s1, 256, %s28, [#allocation7], 64, 64, 4
    $region9: #{tpu_custom_call.1} parent=1 // pred_fallthru
      _
    // Predicated region
    $region10: #{tpu_custom_call.1} parent=1 // pred_check
      _
    $region11: #{tpu_custom_call.1} parent=1 // pred_check_branch
      %35 = sbr.rel (0) target = $region13
    $region12: #{tpu_custom_call.1} parent=1 // pred_region
      %36 = dma.done [#allocation4], 128
    $region13: #{tpu_custom_call.1} parent=1 // pred_fallthru
      _
    // Predicated region
    $region14: #{tpu_custom_call.1} parent=1 // pred_check
      _
    $region15: #{tpu_custom_call.1} parent=1 // pred_check_branch
      %38 = sbr.rel (0) target = $region17
    $region16: #{tpu_custom_call.1} parent=1 // pred_region
      %39 = dma.done [#allocation7], 256
    $region17: #{tpu_custom_call.1} parent=1 // pred_fallthru
      _
    %p41 = scmp.eq.s32.totalorder 0, 0
    // Predicated region
    $region18: #{tpu_custom_call.1} parent=1 // pred_check
      %p42 = pneg %p41
    $region19: #{tpu_custom_call.1} parent=1 // pred_check_branch
      %44 = sbr.rel (%p42) target = $region21
    $region20: #{tpu_custom_call.1} parent=1 // pred_region
      %vm45 = vcmask 785408
      %46 = vst.msk [vmem:[#allocation2] sm:$0xff] %vm45, 0.0
      %47 = vst.msk [vmem:[#allocation2 + $0x8] sm:$0xff] %vm45, 0.0
    $region21: #{tpu_custom_call.1} parent=1 // pred_fallthru
      _
    %v48 = vld [vmem:[#allocation2] sm:$0xff]
    %v49 = vld [vmem:[#allocation2 + $0x8] sm:$0xff]
    %v50 = vld [vmem:[#allocation3] sm:$0xf]
    %v51 = vld [vmem:[#allocation3 + $0x4] sm:$0xf]
    %v52 = vld [vmem:[#allocation6] sm:$0xf]
    %v53 = vld [vmem:[#allocation6 + $0x4] sm:$0xf]
    %v54 = vld [vmem:[#allocation6 + $0x8] sm:$0xf]
    %v55 = vld [vmem:[#allocation6 + $0xc] sm:$0xf]
    %v58 = vunpack.c.l.b16 %v50
    %v59 = vunpack.c.l.b16 %v51
    %v60 = vpack.c.b16 %v59, %v58
    %v65 = vunpack.c.l.b16 %v52
    %v66 = vunpack.c.l.b16 %v53
    %v67 = vunpack.c.l.b16 %v54
    %v68 = vunpack.c.l.b16 %v55
    %v69 = vpack.c.b16 %v66, %v65
    %v70 = vpack.c.b16 %v68, %v67
    %vm73 = vcmask 261120
    %v75 = vsel %vm73, %v60, 0
    %77 = vmatprep.subr.bf16.mxu0 0
    %78 = vmatpush1.bf16.msra.mxu0 0
    %79 = vmatprep.subr.bf16.mxu0 0
    %80 = vmatpush1.bf16.msra.mxu0 0
    %81 = vmatprep.subr.bf16.mxu0 0
    %82 = vmatpush1.bf16.msra.mxu0 0
    %83 = vmatprep.subr.bf16.mxu0 0
    %84 = vmatpush1.bf16.msra.mxu0 0
    %85 = vmatprep.subr.bf16.mxu0 0
    %86 = vmatpush1.bf16.msra.mxu0 0
    %87 = vmatprep.subr.bf16.mxu0 0
    %88 = vmatpush1.bf16.msra.mxu0 0
    %89 = vmatprep.subr.bf16.mxu0 0
    %90 = vmatpush1.bf16.msra.mxu0 %v70
    %91 = vmatprep.subr.bf16.mxu0 0
    %92 = vmatpush1.bf16.msra.mxu0 %v69
    %93 = vmatprep.subr.bf16.mxu0 0
    %94 = vmatpush2.bf16.msra.mxu0 0
    %95 = vmatprep.subr.bf16.mxu0 0
    %96 = vmatpush2.bf16.msra.mxu0 0
    %97 = vmatprep.subr.bf16.mxu0 0
    %98 = vmatpush2.bf16.msra.mxu0 0
    %99 = vmatprep.subr.bf16.mxu0 0
    %100 = vmatpush2.bf16.msra.mxu0 0
    %101 = vmatprep.subr.bf16.mxu0 0
    %102 = vmatpush2.bf16.msra.mxu0 0
    %103 = vmatprep.subr.bf16.mxu0 0
    %104 = vmatpush2.bf16.msra.mxu0 0
    %105 = vmatprep.subr.bf16.mxu0 0
    %106 = vmatpush2.bf16.msra.mxu0 0
    %107 = vmatprep.subr.bf16.mxu0 0
    %108 = vmatpush2.bf16.msra.mxu0 0
    %109 = vmatprep.mubr.bf16.mxu0 0
    %110 = vmatmul.mubr.bf16.gmra.mxu0 %v75
    %v111 = vpop.f32.mrf.mxu0
    %v112 = vadd.f32 0.0, %v111
    %v113 = vpop.f32.mrf.mxu0
    %v114 = vpop.f32.mrf.mxu0
    %v115 = vadd.f32 0.0, %v114
    %v116 = vpop.f32.mrf.mxu0
    %117 = vdwg.mxu0
    %v118 = vadd.f32 %v48, %v112
    %v119 = vadd.f32 %v49, %v115
    %vm120 = vcmask 785408
    %121 = vst.msk [vmem:[#allocation2] sm:$0xff] %vm120, %v118
    %122 = vst.msk [vmem:[#allocation2 + $0x8] sm:$0xff] %vm120, %v119
    // Predicated region
    $region22: #{tpu_custom_call.1} parent=1 // pred_check
      %p123 = pneg %p41
    $region23: #{tpu_custom_call.1} parent=1 // pred_check_branch
      %125 = sbr.rel (%p123) target = $region25
    $region24: #{tpu_custom_call.1} parent=1 // pred_region
      %v126 = vld [vmem:[#allocation2] sm:$0xff]
      %v127 = vld [vmem:[#allocation2 + $0x8] sm:$0xff]
      %v128 = vpack.c.bf16 %v127, %v126
      %v130 = vunpack.c.l.b16 %v128
      %v131 = vunpack.c.h.b16 %v128
      %v132 = vpack.c.b16 %v130, %v130
      %v133 = vpack.c.b16 %v131, %v131
      %vm136 = vcmask 781312
      %137 = vst.msk [vmem:[#allocation8] sm:$0xf] %vm136, %v132
      %138 = vst.msk [vmem:[#allocation8 + $0x4] sm:$0xf] %vm136, %v133
    $region25: #{tpu_custom_call.1} parent=1 // pred_fallthru
      _
    // Predicated region
    $region26: #{tpu_custom_call.1} parent=1 // pred_check
      _
    $region27: #{tpu_custom_call.1} parent=1 // pred_check_branch
      %140 = sbr.rel (0) target = $region29
    $region28: #{tpu_custom_call.1} parent=1 // pred_region
      %s142 = ssub.s32 128, 128
      %143 = vsyncadd [#allocation5], %s142
      %s144 = sshll.u32 [#allocation8], 4
      %s145 = int_to_ptr.vmem [resolvable:$true] %s144
      %150 = dma.vmem_to_hbm [thread:$0]  %s145, 128, %s2, [#allocation5], 64, 64, 4
    $region29: #{tpu_custom_call.1} parent=1 // pred_fallthru
      _
    // Predicated region
    $region30: #{tpu_custom_call.1} parent=1 // pred_check
      _
    $region31: #{tpu_custom_call.1} parent=1 // pred_check_branch
      %152 = sbr.rel (0) target = $region33
    $region32: #{tpu_custom_call.1} parent=1 // pred_region
      %153 = dma.done [#allocation5], 128
    $region33: #{tpu_custom_call.1} parent=1 // pred_fallthru
      _
    %154 = vsyncpa [#allocation4], 1
    %155 = vsyncpa [#allocation7], 1
    %156 = vsyncpa [#allocation5], 1

</llo_original>
